<compile_context>
chip_gen: v7x
topology: tpu7x:2x2x1
jax: 0.10.0
libtpu: 0.0.40
codegen_flags: <defaults>
</compile_context>

<pallas_src>
import functools

import jax
import jax.numpy as jnp
from jax.experimental import pallas as pl
from jax.experimental.pallas import tpu as pltpu

_LANE = 128
_VMEM_LIMIT_CAP = 32 * 1024 * 1024   # scoped cap; safe on v7x (64 MiB physical)
_VMEM_LIMIT_FLOOR = 16 * 1024 * 1024
_BLOCK_BYTES_TARGET = 2 * 1024 * 1024  # tiled bytes per buffer (1-4 MiB sweet spot)
_TARGET_GRID_STEPS = 8                 # >= 4 steps per core on v7x


def _round_up(v, m):
    return (v + m - 1) // m * m


def _sublane(dtype):
    # 8 for f32/i32, 16 for bf16, 32 for int8 (packed sublanes).
    return max(8, 32 // jnp.dtype(dtype).itemsize)


def _flip(a, axis):
    # flip of a size-1 slice is a no-op; skip the reverse in that case.
    return a if a.shape[axis] == 1 else jnp.flip(a, axis=axis)


def _pad_kernel(x_ref, o_ref, *, pad, mode):
    """x_ref: (Cb, H, W); o_ref: (Cb, H+2p, W+2p). Writes o_ref region-by-region."""
    Cb, H, W = x_ref.shape
    p = pad
    dt = x_ref.dtype

    if p == 0:
        o_ref[...] = x_ref[...]
        return

    Hp = H + 2 * p
    Wp = W + 2 * p

    # ---- interior: one big store of the input block at offset (p, p) ----
    o_ref[:, pl.ds(p, H), pl.ds(p, W)] = x_ref[...]

    if mode == "zeros":
        # Memset only the four thin border strips (corners covered by the
        # full-width top/bottom bands).
        o_ref[:, pl.ds(0, p), :] = jnp.zeros((Cb, p, Wp), dt)
        o_ref[:, pl.ds(p + H, p), :] = jnp.zeros((Cb, p, Wp), dt)
        o_ref[:, pl.ds(p, H), pl.ds(0, p)] = jnp.zeros((Cb, H, p), dt)
        o_ref[:, pl.ds(p, H), pl.ds(p + W, p)] = jnp.zeros((Cb, H, p), dt)
        return

    # ---- edge sources: read thin slices directly from x_ref (small loads) ----
    if mode == "reflect":
        top = _flip(x_ref[:, pl.ds(1, p), :], 1)                # input rows p..1
        bot = _flip(x_ref[:, pl.ds(H - 1 - p, p), :], 1)        # rows H-2..H-1-p
        left = _flip(x_ref[:, :, pl.ds(1, p)], 2)               # cols p..1
        right = _flip(x_ref[:, :, pl.ds(W - 1 - p, p)], 2)      # cols W-2..W-1-p
    else:  # replicate
        top = jnp.broadcast_to(x_ref[:, pl.ds(0, 1), :], (Cb, p, W))
        bot = jnp.broadcast_to(x_ref[:, pl.ds(H - 1, 1), :], (Cb, p, W))
        left = jnp.broadcast_to(x_ref[:, :, pl.ds(0, 1)], (Cb, H, p))
        right = jnp.broadcast_to(x_ref[:, :, pl.ds(W - 1, 1)], (Cb, H, p))

    # Corners derive from the row-edges (reflection / replication composes).
    if mode == "reflect":
        tl = _flip(top[:, :, 1:p + 1], 2)
        tr = _flip(top[:, :, W - 1 - p:W - 1], 2)
        bl = _flip(bot[:, :, 1:p + 1], 2)
        br = _flip(bot[:, :, W - 1 - p:W - 1], 2)
    else:  # replicate
        tl = jnp.broadcast_to(top[:, :, 0:1], (Cb, p, p))
        tr = jnp.broadcast_to(top[:, :, W - 1:W], (Cb, p, p))
        bl = jnp.broadcast_to(bot[:, :, 0:1], (Cb, p, p))
        br = jnp.broadcast_to(bot[:, :, W - 1:W], (Cb, p, p))

    # ---- eight border region writes (interior already stored) ----
    o_ref[:, pl.ds(0, p), pl.ds(p, W)] = top
    o_ref[:, pl.ds(p + H, p), pl.ds(p, W)] = bot
    o_ref[:, pl.ds(p, H), pl.ds(0, p)] = left
    o_ref[:, pl.ds(p, H), pl.ds(p + W, p)] = right
    o_ref[:, pl.ds(0, p), pl.ds(0, p)] = tl
    o_ref[:, pl.ds(0, p), pl.ds(p + W, p)] = tr
    o_ref[:, pl.ds(p + H, p), pl.ds(0, p)] = bl
    o_ref[:, pl.ds(p + H, p), pl.ds(p + W, p)] = br


def _xla_pad(x, p, mode):
    jmode = {"reflect": "reflect", "zeros": "constant", "replicate": "edge"}[mode]
    return jnp.pad(x, ((0, 0), (0, 0), (p, p), (p, p)), mode=jmode)


def pad_layer(x, padding=1, padding_mode="reflect", *, dispatch="auto"):
    """Pallas equivalent of PadLayer.forward. x: (N, C, H, W), NCHW like PyTorch.

    dispatch:
      "auto"   - use the Pallas kernel when the padded width is lane-dense
                 (Wp >= 128) and the per-channel plane fits a modest VMEM
                 budget; otherwise fall back to XLA jnp.pad (same semantics).
      "pallas" - always run the Pallas kernel (used for testing small shapes).
      "xla"    - always use jnp.pad.
    """
    assert padding_mode in ("reflect", "zeros", "replicate")
    assert padding >= 0
    assert dispatch in ("auto", "pallas", "xla")
    N, C, H, W = x.shape
    p = padding
    if padding_mode == "reflect":
        assert p < H and p < W, "reflect padding must be smaller than spatial dims"
    if p == 0:
        return x
    Hp, Wp = H + 2 * p, W + 2 * p

    NC = N * C
    dtype_bytes = jnp.dtype(x.dtype).itemsize
    sub = _sublane(x.dtype)
    # Real (tiled) VMEM footprint per channel plane: sublane x 128-lane tiling.
    in_tile = _round_up(H, sub) * _round_up(W, _LANE) * dtype_bytes
    out_tile = _round_up(Hp, sub) * _round_up(Wp, _LANE) * dtype_bytes

    # One channel plane must fit (double-buffered in+out, plus headroom).
    fits_vmem = 3 * (in_tile + out_tile) <= _VMEM_LIMIT_CAP
    lane_dense = Wp >= _LANE

    if dispatch == "xla":
        return _xla_pad(x, p, padding_mode)
    if dispatch == "auto" and not (fits_vmem and lane_dense):
        # Tiny spatial dims -> masked ~Wp/128 lane stores dominate; a single
        # oversized plane -> would not fit VMEM. XLA pad is the better tool.
        return _xla_pad(x, p, padding_mode)
    if dispatch == "pallas" and not fits_vmem:
        raise ValueError("pad_layer: single channel plane too large for the "
                         "Pallas path's VMEM budget; use dispatch='auto'/'xla'.")

    # --- channel block sizing (tiled-VMEM aware, >= 8 grid steps when possible) ---
    max_by_bytes = max(1, _BLOCK_BYTES_TARGET // max(in_tile, out_tile))
    max_by_steps = max(1, NC // _TARGET_GRID_STEPS)
    c_blk = int(max(1, min(NC, max_by_bytes, max_by_steps)))
    grid = (pl.cdiv(NC, c_blk),)

    # Scoped VMEM: double-buffered in+out blocks + headroom for edge temporaries.
    blk_bytes = c_blk * (in_tile + out_tile)
    vmem_limit = int(min(_VMEM_LIMIT_CAP, max(_VMEM_LIMIT_FLOOR, 3 * blk_bytes)))

    xf = x.reshape(NC, H, W)  # NCHW contiguous -> free reshape
    kernel = functools.partial(_pad_kernel, pad=p, mode=padding_mode)
    cost = pl.CostEstimate(
        flops=0,
        transcendentals=0,
        bytes_accessed=int((H * W + Hp * Wp) * NC * dtype_bytes),
    )

    out = pl.pallas_call(
        kernel,
        out_shape=jax.ShapeDtypeStruct((NC, Hp, Wp), x.dtype),
        grid=grid,
        in_specs=[pl.BlockSpec((c_blk, H, W), lambda i: (i, 0, 0))],
        out_specs=pl.BlockSpec((c_blk, Hp, Wp), lambda i: (i, 0, 0)),
        compiler_params=pltpu.CompilerParams(
            dimension_semantics=("parallel",),
            vmem_limit_bytes=vmem_limit,
        ),
        cost_estimate=cost,
    )(xf)
    return out.reshape(N, C, Hp, Wp)


if __name__ == "__main__":
    key = jax.random.PRNGKey(0)
    x = jax.random.normal(key, (2, 4, 16, 16), dtype=jnp.float32)

    # Default PadLayer config: padding=1, REFLECT. Force the Pallas path so the
    # kernel itself is exercised on these small shapes.
    out = jax.block_until_ready(pad_layer(x, 1, "reflect", dispatch="pallas"))
    ref = jnp.pad(x, ((0, 0), (0, 0), (1, 1), (1, 1)), mode="reflect")
    assert out.shape == (2, 4, 18, 18), out.shape
    assert jnp.allclose(out, ref), "mismatch vs reflect-pad reference"

    # Other padding modes supported by the module.
    out_z = jax.block_until_ready(pad_layer(x, 1, "zeros", dispatch="pallas"))
    assert jnp.allclose(out_z, jnp.pad(x, ((0, 0), (0, 0), (1, 1), (1, 1)), mode="constant"))

    out_r = jax.block_until_ready(pad_layer(x, 1, "replicate", dispatch="pallas"))
    assert jnp.allclose(out_r, jnp.pad(x, ((0, 0), (0, 0), (1, 1), (1, 1)), mode="edge"))

    # padding=2 exercises multi-row/col edges and corners.
    out2 = jax.block_until_ready(pad_layer(x, 2, "reflect", dispatch="pallas"))
    assert out2.shape == (2, 4, 20, 20)
    assert jnp.allclose(out2, jnp.pad(x, ((0, 0), (0, 0), (2, 2), (2, 2)), mode="reflect"))

    out2r = jax.block_until_ready(pad_layer(x, 2, "replicate", dispatch="pallas"))
    assert jnp.allclose(out2r, jnp.pad(x, ((0, 0), (0, 0), (2, 2), (2, 2)), mode="edge"))

    # Ragged channel blocking: NC=42 -> c_blk=5 -> 9 grid steps, last one partial.
    xr = jax.random.normal(jax.random.PRNGKey(1), (2, 21, 16, 16), jnp.float32)
    out_rg = jax.block_until_ready(pad_layer(xr, 1, "reflect", dispatch="pallas"))
    assert jnp.allclose(out_rg, jnp.pad(xr, ((0, 0), (0, 0), (1, 1), (1, 1)), mode="reflect"))

    # Lane-dense case (Wp >= 128): auto dispatch keeps the Pallas path.
    xw = jax.random.normal(jax.random.PRNGKey(2), (2, 4, 16, 128), jnp.float32)
    out_w = jax.block_until_ready(pad_layer(xw, 1, "reflect"))
    assert jnp.allclose(out_w, jnp.pad(xw, ((0, 0), (0, 0), (1, 1), (1, 1)), mode="reflect"))

    # Tiny-W auto dispatch falls back to XLA pad; results must be identical.
    out_auto = jax.block_until_ready(pad_layer(x, 1, "reflect"))
    assert jnp.allclose(out_auto, ref)

    print("KERNEL_OK")
</pallas_src>

<mosaic_0001>
module attributes {stable_mosaic.version = 11 : i64} {
  func.func @_pad_kernel(%arg0: i32, %arg1: memref<1x16x16xf32, #tpu.memory_space<vmem>>, %arg2: memref<1x18x18xf32, #tpu.memory_space<vmem>>) attributes {dimension_semantics = [#tpu.dimension_semantics<parallel>], iteration_bounds = array<i64: 8>, scalar_prefetch = 0 : i64, scratch_operands = 0 : i64, tpu.core_type = #tpu.core_type<tc>, window_params = [{transform_indices = @transform_0, window_bounds = array<i64: 1, 16, 16>}, {transform_indices = @transform_1, window_bounds = array<i64: 1, 18, 18>}]} {
    %c0 = arith.constant 0 : index
    %c0_0 = arith.constant 0 : index
    %c0_1 = arith.constant 0 : index
    %0 = vector.load %arg1[%c0, %c0_0, %c0_1] : memref<1x16x16xf32, #tpu.memory_space<vmem>>, vector<1x16x16xf32>
    %c0_2 = arith.constant 0 : index
    %c1 = arith.constant 1 : index
    %c1_3 = arith.constant 1 : index
    %1 = vector.load %arg2[%c0_2, %c1, %c1_3] : memref<1x18x18xf32, #tpu.memory_space<vmem>>, vector<1x16x16xf32>
    tpu.vector_store %arg2[%c0_2, %c1, %c1_3], %0 {strides = array<i32>} : memref<1x18x18xf32, #tpu.memory_space<vmem>>, vector<1x16x16xf32>,
    %c0_4 = arith.constant 0 : index
    %c1_5 = arith.constant 1 : index
    %c0_6 = arith.constant 0 : index
    %2 = vector.load %arg1[%c0_4, %c1_5, %c0_6] : memref<1x16x16xf32, #tpu.memory_space<vmem>>, vector<1x1x16xf32>
    %c0_7 = arith.constant 0 : index
    %c14 = arith.constant 14 : index
    %c0_8 = arith.constant 0 : index
    %3 = vector.load %arg1[%c0_7, %c14, %c0_8] : memref<1x16x16xf32, #tpu.memory_space<vmem>>, vector<1x1x16xf32>
    %c0_9 = arith.constant 0 : index
    %c0_10 = arith.constant 0 : index
    %c1_11 = arith.constant 1 : index
    %4 = vector.load %arg1[%c0_9, %c0_10, %c1_11] : memref<1x16x16xf32, #tpu.memory_space<vmem>>, vector<1x16x1xf32>
    %c0_12 = arith.constant 0 : index
    %c0_13 = arith.constant 0 : index
    %c14_14 = arith.constant 14 : index
    %5 = vector.load %arg1[%c0_12, %c0_13, %c14_14] : memref<1x16x16xf32, #tpu.memory_space<vmem>>, vector<1x16x1xf32>
    %6 = vector.extract_strided_slice %2 {offsets = [0, 0, 1], sizes = [1, 1, 1], strides = [1, 1, 1]} : vector<1x1x16xf32> to vector<1x1x1xf32>
    %7 = vector.extract_strided_slice %2 {offsets = [0, 0, 14], sizes = [1, 1, 1], strides = [1, 1, 1]} : vector<1x1x16xf32> to vector<1x1x1xf32>
    %8 = vector.extract_strided_slice %3 {offsets = [0, 0, 1], sizes = [1, 1, 1], strides = [1, 1, 1]} : vector<1x1x16xf32> to vector<1x1x1xf32>
    %9 = vector.extract_strided_slice %3 {offsets = [0, 0, 14], sizes = [1, 1, 1], strides = [1, 1, 1]} : vector<1x1x16xf32> to vector<1x1x1xf32>
    %c0_15 = arith.constant 0 : index
    %c0_16 = arith.constant 0 : index
    %c1_17 = arith.constant 1 : index
    %10 = vector.load %arg2[%c0_15, %c0_16, %c1_17] : memref<1x18x18xf32, #tpu.memory_space<vmem>>, vector<1x1x16xf32>
    tpu.vector_store %arg2[%c0_15, %c0_16, %c1_17], %2 {strides = array<i32>} : memref<1x18x18xf32, #tpu.memory_space<vmem>>, vector<1x1x16xf32>,
    %c0_18 = arith.constant 0 : index
    %c17 = arith.constant 17 : index
    %c1_19 = arith.constant 1 : index
    %11 = vector.load %arg2[%c0_18, %c17, %c1_19] : memref<1x18x18xf32, #tpu.memory_space<vmem>>, vector<1x1x16xf32>
    tpu.vector_store %arg2[%c0_18, %c17, %c1_19], %3 {strides = array<i32>} : memref<1x18x18xf32, #tpu.memory_space<vmem>>, vector<1x1x16xf32>,
    %c0_20 = arith.constant 0 : index
    %c1_21 = arith.constant 1 : index
    %c0_22 = arith.constant 0 : index
    %12 = vector.load %arg2[%c0_20, %c1_21, %c0_22] : memref<1x18x18xf32, #tpu.memory_space<vmem>>, vector<1x16x1xf32>
    tpu.vector_store %arg2[%c0_20, %c1_21, %c0_22], %4 {strides = array<i32>} : memref<1x18x18xf32, #tpu.memory_space<vmem>>, vector<1x16x1xf32>,
    %c0_23 = arith.constant 0 : index
    %c1_24 = arith.constant 1 : index
    %c17_25 = arith.constant 17 : index
    %13 = vector.load %arg2[%c0_23, %c1_24, %c17_25] : memref<1x18x18xf32, #tpu.memory_space<vmem>>, vector<1x16x1xf32>
    tpu.vector_store %arg2[%c0_23, %c1_24, %c17_25], %5 {strides = array<i32>} : memref<1x18x18xf32, #tpu.memory_space<vmem>>, vector<1x16x1xf32>,
    %c0_26 = arith.constant 0 : index
    %c0_27 = arith.constant 0 : index
    %c0_28 = arith.constant 0 : index
    %14 = vector.load %arg2[%c0_26, %c0_27, %c0_28] : memref<1x18x18xf32, #tpu.memory_space<vmem>>, vector<1x1x1xf32>
    tpu.vector_store %arg2[%c0_26, %c0_27, %c0_28], %6 {strides = array<i32>} : memref<1x18x18xf32, #tpu.memory_space<vmem>>, vector<1x1x1xf32>,
    %c0_29 = arith.constant 0 : index
    %c0_30 = arith.constant 0 : index
    %c17_31 = arith.constant 17 : index
    %15 = vector.load %arg2[%c0_29, %c0_30, %c17_31] : memref<1x18x18xf32, #tpu.memory_space<vmem>>, vector<1x1x1xf32>
    tpu.vector_store %arg2[%c0_29, %c0_30, %c17_31], %7 {strides = array<i32>} : memref<1x18x18xf32, #tpu.memory_space<vmem>>, vector<1x1x1xf32>,
    %c0_32 = arith.constant 0 : index
    %c17_33 = arith.constant 17 : index
    %c0_34 = arith.constant 0 : index
    %16 = vector.load %arg2[%c0_32, %c17_33, %c0_34] : memref<1x18x18xf32, #tpu.memory_space<vmem>>, vector<1x1x1xf32>
    tpu.vector_store %arg2[%c0_32, %c17_33, %c0_34], %8 {strides = array<i32>} : memref<1x18x18xf32, #tpu.memory_space<vmem>>, vector<1x1x1xf32>,
    %c0_35 = arith.constant 0 : index
    %c17_36 = arith.constant 17 : index
    %c17_37 = arith.constant 17 : index
    %17 = vector.load %arg2[%c0_35, %c17_36, %c17_37] : memref<1x18x18xf32, #tpu.memory_space<vmem>>, vector<1x1x1xf32>
    tpu.vector_store %arg2[%c0_35, %c17_36, %c17_37], %9 {strides = array<i32>} : memref<1x18x18xf32, #tpu.memory_space<vmem>>, vector<1x1x1xf32>,
    return
  }
  func.func @transform_0(%arg0: i32) -> (i32, i32, i32) {
    %c0_i32 = arith.constant 0 : i32
    %c0_i32_0 = arith.constant 0 : i32
    %c0_i32_1 = arith.constant 0 : i32
    return %arg0, %c0_i32, %c0_i32_0 : i32, i32, i32
  }
  func.func @transform_1(%arg0: i32) -> (i32, i32, i32) {
    %c0_i32 = arith.constant 0 : i32
    %c0_i32_0 = arith.constant 0 : i32
    %c0_i32_1 = arith.constant 0 : i32
    return %arg0, %c0_i32, %c0_i32_0 : i32, i32, i32
  }
}

</mosaic_0001>

<llo_original>
// kernel: tpu_custom_call.1
$region0: #{tpu_custom_call.1}
  #allocation0 [shape = 'u32[]', space=smem, size = 0x4, offset = 0x4, fixed_abs, tag = 'smem constant byte address 0x4 - core index']
  #allocation1 [shape = 'u32[144,128]{1,0:T(1,128)}', space=vmem, size = 0x12000, scoped, tag = 'internal scratch']
  %s0 = inlined_call_operand.hbm [shape: f32[8,16,16], index: 0, kind: input, shape index: {}]
  %s1 = inlined_call_operand.vmem [shape: f32[8,18,18], index: 1, kind: output, shape index: {}]
  %s2 = sld [smem:[#allocation0]]
  $region41: #{tpu_custom_call.1} parent=0
    _
  %s4 = ssub.s32 1, %s2
  %s5 = scalar_select 0, %s4, %s2
  $region1: #{tpu_custom_call.1} parent=0
    #allocation2 [shape = 'u8[16384]{0}', space=vmem, size = 0x4000, scoped, tag = 'input window, operand 0']
    #allocation3 [shape = 's32[2]{0}', space=sflag, size = 0x8, scoped, tag = 'scoped memory for tpu_custom_call.1']
    %6 = vsyncpa [#allocation3], 0
    %s7 = scalar_lea.sflag [#allocation3], 1
    %8 = vsyncpa %s7, 0
    loop: start=0, step=1, limit=10
    $region2: #{tpu_custom_call.1} parent=1 // loop_pre_header
      _
    $region3: #{tpu_custom_call.1} parent=1 // loop_header
      %s10 = sphi 0, %s14
      %p11 = scmp.ge.s32.totalorder %s10, 10
      %s20 = sphi 0, %s22
      %s23 = sphi 0, %s20
      %s24 = sphi 0, %s23
      %s40 = sphi 0, %s24
      %s46 = sphi 0, %s48
      %s49 = sphi 0, %s46
      %s50 = sphi 0, %s49
      %s66 = sphi 0, %s50
    $region4: #{tpu_custom_call.1} parent=1 // loop_header_branch
      %13 = sbr.rel (%p11) target = $region8
    $region5: #{tpu_custom_call.1} parent=1 // loop_body
      %s15 = ssub.s32 %s10, 1
      %s16 = ssub.s32 %s10, 2
      %s17 = sadd.s32 %s10, 1
      %s18 = ssub.s32 %s10, %s17
      %p19 = scmp.eq.s32.totalorder %s18, 0
      %s21 = sadd.s32 %s20, 1
      %s22 = scalar_select %p19, %s20, %s21
      %p25 = pneg %p19
      %p26 = scmp.eq.s32.totalorder %s10, 7
      %p27 = por %p25, %p26
      %p28 = scmp.ne.s32.totalorder %s20, %s23
      %p29 = scmp.eq.s32.totalorder %s10, 0
      %p30 = por %p28, %p29
      %p31 = scmp.ne.s32.totalorder %s20, %s23
      %p32 = scmp.eq.s32.totalorder %s15, 7
      %p33 = por %p31, %p32
      %p34 = scmp.ne.s32.totalorder %s23, %s24
      %p35 = scmp.eq.s32.totalorder %s15, 0
      %p36 = por %p34, %p35
      %p37 = scmp.ne.s32.totalorder %s23, %s24
      %p38 = scmp.eq.s32.totalorder %s16, 7
      %p39 = por %p37, %p38
      %p41 = scmp.ne.s32.totalorder %s24, %s40
      %p42 = scmp.eq.s32.totalorder %s16, 0
      %p43 = por %p41, %p42
      %s44 = ssub.s32 %s10, %s17
      %p45 = scmp.eq.s32.totalorder %s44, 0
      %s47 = sadd.s32 %s46, 1
      %s48 = scalar_select %p45, %s46, %s47
      %p51 = pneg %p45
      %p52 = scmp.eq.s32.totalorder %s10, 7
      %p53 = por %p51, %p52
      %p54 = scmp.ne.s32.totalorder %s46, %s49
      %p55 = scmp.eq.s32.totalorder %s10, 0
      %p56 = por %p54, %p55
      %p57 = scmp.ne.s32.totalorder %s46, %s49
      %p58 = scmp.eq.s32.totalorder %s15, 7
      %p59 = por %p57, %p58
      %p60 = scmp.ne.s32.totalorder %s49, %s50
      %p61 = scmp.eq.s32.totalorder %s15, 0
      %p62 = por %p60, %p61
      %p63 = scmp.ne.s32.totalorder %s49, %s50
      %p64 = scmp.eq.s32.totalorder %s16, 7
      %p65 = por %p63, %p64
      %p67 = scmp.ne.s32.totalorder %s50, %s66
      %p68 = scmp.eq.s32.totalorder %s16, 0
      %p69 = por %p67, %p68
      %p70 = scmp.le.s32.totalorder 1, %s10
      %p71 = scmp.lt.s32.totalorder %s10, 9
      %p72 = pnand %p70, %p71
      %p73 = pneg %p72
      // Predicated region
      $region9: #{tpu_custom_call.1} parent=5 // pred_check
        _
      $region10: #{tpu_custom_call.1} parent=5 // pred_check_branch
        %75 = sbr.rel (%p72) target = $region12
      $region11: #{tpu_custom_call.1} parent=5 // pred_region
        %s76 = ssub.s32 %s10, 1
      $region12: #{tpu_custom_call.1} parent=5 // pred_fallthru
        _
      %p77 = scmp.lt.s32.totalorder %s10, 8
      // Predicated region
      $region13: #{tpu_custom_call.1} parent=5 // pred_check
        %p78 = pneg %p77
      $region14: #{tpu_custom_call.1} parent=5 // pred_check_branch
        %80 = sbr.rel (%p78) target = $region16
      $region15: #{tpu_custom_call.1} parent=5 // pred_region
        // Predicated region
        $region17: #{tpu_custom_call.1} parent=15 // pred_check
          %p81 = pneg %p30
        $region18: #{tpu_custom_call.1} parent=15 // pred_check_branch
          %83 = sbr.rel (%p81) target = $region20
        $region19: #{tpu_custom_call.1} parent=15 // pred_region
          %s84 = sand.u32 %s20, 1
          %s85 = scalar_lea.sflag [#allocation3], %s84
          %s86 = sand.u32 %s20, 1
          %s87 = smul.addr %s86, 16
          %s88 = scalar_lea.vmem [#allocation2], %s87
          %s90 = ssub.s32 256, 256
          %91 = vsyncadd %s85, %s90
          %s92 = smul.addr %s10, 2
          %s93 = smul.addr %s92, 128
          %s94 = scalar_lea.hbm %s0, %s93
          %s95 = sshll.u32 %s88, 4
          %s96 = int_to_ptr.vmem [resolvable:$true] %s95
          %101 = dma.hbm_to_vmem [thread:$0]  %s94, 256, %s96, %s85, 128, 128, 8
        $region20: #{tpu_custom_call.1} parent=15 // pred_fallthru
          _
      $region16: #{tpu_custom_call.1} parent=5 // pred_fallthru
        _
      %p102 = scmp.le.s32.totalorder 1, %s10
      %p103 = scmp.lt.s32.totalorder %s10, 9
      %p104 = pnand %p102, %p103
      %p105 = pneg %p104
      // Predicated region
      $region21: #{tpu_custom_call.1} parent=5 // pred_check
        _
      $region22: #{tpu_custom_call.1} parent=5 // pred_check_branch
        %107 = sbr.rel (%p104) target = $region24
      $region23: #{tpu_custom_call.1} parent=5 // pred_region
        %s108 = ssub.s32 %s10, 1
        %s109 = sand.u32 %s23, 1
        %s110 = scalar_lea.sflag [#allocation3], %s109
        %s111 = sand.u32 %s23, 1
        %s112 = smul.addr %s111, 16
        %s113 = scalar_lea.vmem [#allocation2], %s112
        // Predicated region
        $region25: #{tpu_custom_call.1} parent=23 // pred_check
          %p114 = pneg %p36
        $region26: #{tpu_custom_call.1} parent=23 // pred_check_branch
          %116 = sbr.rel (%p114) target = $region28
        $region27: #{tpu_custom_call.1} parent=23 // pred_region
          %117 = dma.done %s110, 256
        $region28: #{tpu_custom_call.1} parent=23 // pred_fallthru
          _
        %s118 = sand.u32 %s23, 1
        %s119 = scalar_lea.sflag [#allocation3], %s118
        %s120 = sand.u32 %s23, 1
        %s121 = smul.addr %s120, 16
        %s122 = scalar_lea.vmem [#allocation2], %s121
        %p123 = pneg %p36
        %p124 = pneg %p33
        %p125 = pneg %p62
        %p126 = pneg %p59
        %p127 = scmp.lt.s32.totalorder %s15, 7
        %s128 = scalar_select %p127, %s15, 7
        %s129 = smul.addr %s128, 3
        %s130 = smul.addr %s129, 8
        %s131 = scalar_lea.vmem %s1, %s130
        %p132 = scmp.lt.s32.totalorder %s15, 7
        %s133 = scalar_select %p132, %s15, 7
        %s134 = smul.addr %s133, 3
        %s135 = smul.addr %s134, 8
        %s136 = scalar_lea.vmem %s1, %s135
        %v137 = vld [vmem:[%s113] sm:$0xff]
        %v138 = vld [vmem:[%s113 + $0x8] sm:$0xff]
        %141 = vrot.lane.b32.xlu0 %v137, 1
        %v142 = vpop.permute.xlu0 %141
        %143 = vrot.lane.b32.xlu0 %v138, 1
        %v144 = vpop.permute.xlu0 %143
        %vm147 = vcmask 138248
        %148 = vst.msk [vmem:[%s136 + $0x1] sm:$0xff] %vm147, %v142
        %149 = vst.msk [vmem:[%s136 + $0x9] sm:$0xff] %vm147, %v144
        %v150 = vld [vmem:[%s113 + $0x1] sm:$0x1]
        %v151 = vld [vmem:[%s113 + $0xe] sm:$0x1]
        %v152 = vld [vmem:[%s113] sm:$0xff]
        %v153 = vld [vmem:[%s113 + $0x8] sm:$0xff]
        %155 = vrot.lane.b32.xlu0 %v150, 1
        %v156 = vpop.permute.xlu0 %155
        %vm158 = vcmask 131080
        %159 = vst.msk [vmem:[%s136] sm:$0x1] %vm158, %v156
        %161 = vrot.lane.b32.xlu0 %v151, 1
        %v162 = vpop.permute.xlu0 %161
        %164 = vst.msk [vmem:[%s136 + $0x11] sm:$0x1] %vm158, %v162
        %167 = vrot.lane.b32.xlu0 %v152, 127
        %v168 = vpop.permute.xlu0 %167
        %169 = vrot.lane.b32.xlu0 %v153, 127
        %v170 = vpop.permute.xlu0 %169
        %vm173 = vcmask 7168
        %174 = vst.msk [vmem:[%s136 + $0x1] sm:$0xff] %vm173, %v168
        %175 = vst.msk [vmem:[%s136 + $0x9] sm:$0xff] %vm173, %v170
        %176 = vrot.lane.b32.xlu0 %v152, 3
        %v177 = vpop.permute.xlu0 %176
        %178 = vrot.lane.b32.xlu0 %v153, 3
        %v179 = vpop.permute.xlu0 %178
        %vm182 = vcmask 146568
        %183 = vst.msk [vmem:[%s136 + $0x1] sm:$0xff] %vm182, %v177
        %184 = vst.msk [vmem:[%s136 + $0x9] sm:$0xff] %vm182, %v179
        %185 = vrot.lane.b32.xlu0 %v150, 127
        %v186 = vpop.permute.xlu0 %185
        %vm188 = vcmask 0
        %189 = vst.msk [vmem:[%s136] sm:$0x1] %vm188, %v186
        %190 = vrot.lane.b32.xlu0 %v150, 3
        %v191 = vpop.permute.xlu0 %190
        %vm193 = vcmask 139400
        %194 = vst.msk [vmem:[%s136] sm:$0x1] %vm193, %v191
        %195 = vrot.lane.b32.xlu0 %v151, 127
        %v196 = vpop.permute.xlu0 %195
        %198 = vst.msk [vmem:[%s136 + $0x11] sm:$0x1] %vm188, %v196
        %199 = vrot.lane.b32.xlu0 %v151, 3
        %v200 = vpop.permute.xlu0 %199
        %202 = vst.msk [vmem:[%s136 + $0x11] sm:$0x1] %vm193, %v200
        %p203 = scmp.lt.s32.totalorder %s15, 7
        %s204 = scalar_select %p203, %s15, 7
        %s205 = smul.addr %s204, 3
        %s206 = smul.addr %s205, 8
        %s207 = scalar_lea.vmem %s1, %s206
        // Predicated region
        $region29: #{tpu_custom_call.1} parent=23 // pred_check
          %p208 = pneg %p59
        $region30: #{tpu_custom_call.1} parent=23 // pred_check_branch
          %210 = sbr.rel (%p208) target = $region32
        $region31: #{tpu_custom_call.1} parent=23 // pred_region
          _
        $region32: #{tpu_custom_call.1} parent=23 // pred_fallthru
          _
      $region24: #{tpu_custom_call.1} parent=5 // pred_fallthru
        _
      %p211 = scmp.le.s32.totalorder 2, %s10
      // Predicated region
      $region33: #{tpu_custom_call.1} parent=5 // pred_check
        %p212 = pneg %p211
      $region34: #{tpu_custom_call.1} parent=5 // pred_check_branch
        %214 = sbr.rel (%p212) target = $region36
      $region35: #{tpu_custom_call.1} parent=5 // pred_region
        %s215 = ssub.s32 %s10, 2
        // Predicated region
        $region37: #{tpu_custom_call.1} parent=35 // pred_check
          %p216 = pneg %p65
        $region38: #{tpu_custom_call.1} parent=35 // pred_check_branch
          %218 = sbr.rel (%p216) target = $region40
        $region39: #{tpu_custom_call.1} parent=35 // pred_region
          %p219 = scmp.lt.s32.totalorder %s16, 7
          %s220 = scalar_select %p219, %s16, 7
          %s221 = smul.addr %s220, 3
          %s222 = smul.addr %s221, 8
          %s223 = scalar_lea.vmem %s1, %s222
        $region40: #{tpu_custom_call.1} parent=35 // pred_fallthru
          _
      $region36: #{tpu_custom_call.1} parent=5 // pred_fallthru
        _
    $region6: #{tpu_custom_call.1} parent=1 // loop_footer
      %s14 = sadd.s32 1, %s10
    $region7: #{tpu_custom_call.1} parent=1 // loop_footer_branch
      %9 = sbr.rel target = $region3
    $region8: #{tpu_custom_call.1} parent=1 // loop_exit
      _
    %224 = vsyncpa [#allocation3], 1
    %s225 = scalar_lea.sflag [#allocation3], 1
    %226 = vsyncpa %s225, 1

</llo_original>
